<compile_context>
chip_gen: v5e
topology: v5e:2x2
jax: 0.10.0
libtpu: 0.0.40
codegen_flags: <defaults>
</compile_context>

<pallas_src>
import functools

import jax
import jax.numpy as jnp
from jax.experimental import pallas as pl
from jax.experimental.pallas import tpu as pltpu


def _round_up(x, m):
    return (x + m - 1) // m * m


def _qnet_kernel(x_ref, p_ref, out_ref, *, din, feat):
    """One batch tile of the 4-layer MLP.

    x_ref:   (TB, Dp)     f32 activations (batch tile, feature dim padded to 8)
    p_ref:   (4, P+8, P)  f32 packed params; layer l: rows 0:P = W_l, row P = b_l
    out_ref: (TB, P)      f32 (P multiple of 128 -> lane-dense stores)
    """
    a = x_ref[...]
    # Layer 0: contraction dim is the real (8-padded) input width.
    w = p_ref[0, 0:din, :]
    b = p_ref[0, feat:feat + 1, :]
    a = jnp.maximum(jnp.dot(a, w, preferred_element_type=jnp.float32) + b, 0.0)
    # Layers 1..2 (ReLU).
    for layer in (1, 2):
        w = p_ref[layer, 0:feat, :]
        b = p_ref[layer, feat:feat + 1, :]
        a = jnp.maximum(jnp.dot(a, w, preferred_element_type=jnp.float32) + b, 0.0)
    # Layer 3 (no ReLU).
    w = p_ref[3, 0:feat, :]
    b = p_ref[3, feat:feat + 1, :]
    out_ref[...] = (jnp.dot(a, w, preferred_element_type=jnp.float32) + b).astype(out_ref.dtype)


def pack_params(params):
    """Pack 4 layers of (W, b) into ONE (4, P+8, P) f32 slab (single DMA descriptor).

    Call ONCE per parameter update, not per forward pass.  Padded rows/columns
    are exactly zero (required for correctness of the padded-lane scheme).
    """
    D = params["w1"].shape[0]
    A = params["w4"].shape[1]
    P = _round_up(max(D, A, 1), 128)
    rows = P + 8  # bias lives in row index P (its own sublane group)
    buf = jnp.zeros((4, rows, P), jnp.float32)
    for l, (wk, bk) in enumerate([("w1", "b1"), ("w2", "b2"), ("w3", "b3"), ("w4", "b4")]):
        w = params[wk].astype(jnp.float32)
        b = params[bk].astype(jnp.float32).reshape(-1)
        in_f, out_f = w.shape
        buf = buf.at[l, :in_f, :out_f].set(w)
        buf = buf.at[l, P, :out_f].set(b)
    return buf


def _choose_tb(B, Dp, P, rows, vmem_budget=24 << 20):
    """Largest batch tile (<=1024, multiple of 8) whose double-buffered tiles +
    resident params slab fit a v7x-safe VMEM budget."""
    tb = min(1024, _round_up(max(B, 1), 8))
    params_bytes = 2 * 4 * rows * P * 4          # params slab (double-buffered)
    while tb > 8 and 2 * (tb * Dp + tb * P) * 4 + params_bytes > vmem_budget:
        tb = _round_up(tb // 2, 8)
    return max(tb, 8)


def qnet_forward(x, packed, action_num):
    """x: (B, state_dim) f32; packed: pack_params(params); returns (B, action_num)."""
    B, D = x.shape
    _, rows, P = packed.shape
    Dp = _round_up(D, 8)                          # pad feature dim to sublanes only
    TB = _choose_tb(B, Dp, P, rows)
    Bp = _round_up(B, TB)
    nb = Bp // TB

    x = x.astype(jnp.float32)
    if (Bp, Dp) != (B, D):                        # static shape check; cheap single pad
        x = jnp.zeros((Bp, Dp), jnp.float32).at[:B, :D].set(x)

    kernel = functools.partial(_qnet_kernel, din=Dp, feat=P)

    out_padded = pl.pallas_call(
        kernel,
        out_shape=jax.ShapeDtypeStruct((Bp, P), jnp.float32),
        grid_spec=pl.GridSpec(
            grid=(nb,),
            in_specs=[
                pl.BlockSpec((TB, Dp), lambda i: (i, 0)),          # activations: batch-tiled
                pl.BlockSpec((4, rows, P), lambda i: (0, 0, 0)),   # packed params: resident
            ],
            out_specs=pl.BlockSpec((TB, P), lambda i: (i, 0)),
        ),
        compiler_params=pltpu.CompilerParams(
            dimension_semantics=("parallel",),    # shards batch tiles across v7x's 2 TCs
        ),
    )(x, packed)

    return out_padded[:B, :action_num]


def init_params(key, state_dim, action_num):
    """Deterministic init mimicking nn.Linear's uniform(-1/sqrt(in), 1/sqrt(in))."""
    ks = jax.random.split(key, 8)

    def linear(kw, kb, in_f, out_f):
        bound = 1.0 / jnp.sqrt(jnp.float32(in_f))
        w = jax.random.uniform(kw, (in_f, out_f), jnp.float32, -bound, bound)
        b = jax.random.uniform(kb, (1, out_f), jnp.float32, -bound, bound)
        return w, b

    w1, b1 = linear(ks[0], ks[1], state_dim, state_dim)
    w2, b2 = linear(ks[2], ks[3], state_dim, state_dim)
    w3, b3 = linear(ks[4], ks[5], state_dim, state_dim)
    w4, b4 = linear(ks[6], ks[7], state_dim, action_num)
    return {"w1": w1, "b1": b1, "w2": w2, "b2": b2,
            "w3": w3, "b3": b3, "w4": w4, "b4": b4}


def qnet_reference(x, p):
    a = jnp.maximum(x @ p["w1"] + p["b1"], 0.0)
    a = jnp.maximum(a @ p["w2"] + p["b2"], 0.0)
    a = jnp.maximum(a @ p["w3"] + p["b3"], 0.0)
    return a @ p["w4"] + p["b4"]


if __name__ == "__main__":
    state_dim = 32
    action_num = 8
    batch = 8

    key = jax.random.PRNGKey(0)
    k_params, k_x = jax.random.split(key)
    params = init_params(k_params, state_dim, action_num)
    x = jax.random.normal(k_x, (batch, state_dim), jnp.float32)

    # Pack the weights ONCE, outside the per-call path.
    packed = jax.block_until_ready(pack_params(params))

    fwd = jax.jit(qnet_forward, static_argnames=("action_num",))
    out = jax.block_until_ready(fwd(x, packed, action_num=action_num))

    ref = qnet_reference(x, params)
    assert out.shape == (batch, action_num)
    assert jnp.allclose(out, ref, atol=1e-5, rtol=1e-5)

    print("KERNEL_OK")
</pallas_src>

<mosaic_0001>
module attributes {stable_mosaic.version = 11 : i64} {
  func.func @_qnet_kernel(%arg0: i32, %arg1: memref<8x32xf32, #tpu.memory_space<vmem>>, %arg2: memref<4x136x128xf32, #tpu.memory_space<vmem>>, %arg3: memref<8x128xf32, #tpu.memory_space<vmem>>) attributes {dimension_semantics = [#tpu.dimension_semantics<parallel>], iteration_bounds = array<i64: 1>, scalar_prefetch = 0 : i64, scratch_operands = 0 : i64, tpu.core_type = #tpu.core_type<tc>, window_params = [{transform_indices = @transform_0, window_bounds = array<i64: 8, 32>}, {pipeline_mode = #tpu.pipeline_mode<synchronous>, transform_indices = @transform_1, window_bounds = array<i64: 4, 136, 128>}, {transform_indices = @transform_2, window_bounds = array<i64: 8, 128>}]} {
    %c0 = arith.constant 0 : index
    %c0_0 = arith.constant 0 : index
    %0 = vector.load %arg1[%c0, %c0_0] : memref<8x32xf32, #tpu.memory_space<vmem>>, vector<8x32xf32>
    %c0_1 = arith.constant 0 : index
    %c0_2 = arith.constant 0 : index
    %c0_3 = arith.constant 0 : index
    %1 = vector.load %arg2[%c0_1, %c0_2, %c0_3] : memref<4x136x128xf32, #tpu.memory_space<vmem>>, vector<1x32x128xf32>
    %2 = vector.shape_cast %1 : vector<1x32x128xf32> to vector<32x128xf32>
    %c0_4 = arith.constant 0 : index
    %c128 = arith.constant 128 : index
    %c0_5 = arith.constant 0 : index
    %3 = vector.load %arg2[%c0_4, %c128, %c0_5] : memref<4x136x128xf32, #tpu.memory_space<vmem>>, vector<1x1x128xf32>
    %4 = vector.shape_cast %3 : vector<1x1x128xf32> to vector<1x128xf32>
    %cst = arith.constant dense<0.000000e+00> : vector<8x128xf32>
    %5 = tpu.matmul %0, %2, %cst {dimension_numbers = #tpu.dot_dimension_numbers<[1], [0], [0], [1], [0, 0, 1, 1], [], []>} : vector<8x32xf32>, vector<32x128xf32>, vector<8x128xf32> -> vector<8x128xf32>
    %6 = vector.broadcast %4 : vector<1x128xf32> to vector<8x128xf32>
    %7 = arith.addf %5, %6 : vector<8x128xf32>
    %cst_6 = arith.constant 0.000000e+00 : f32
    %8 = vector.broadcast %cst_6 : f32 to vector<8x128xf32>
    %9 = arith.maximumf %7, %8 : vector<8x128xf32>
    %c1 = arith.constant 1 : index
    %c0_7 = arith.constant 0 : index
    %c0_8 = arith.constant 0 : index
    %10 = vector.load %arg2[%c1, %c0_7, %c0_8] : memref<4x136x128xf32, #tpu.memory_space<vmem>>, vector<1x128x128xf32>
    %11 = vector.shape_cast %10 : vector<1x128x128xf32> to vector<128x128xf32>
    %c1_9 = arith.constant 1 : index
    %c128_10 = arith.constant 128 : index
    %c0_11 = arith.constant 0 : index
    %12 = vector.load %arg2[%c1_9, %c128_10, %c0_11] : memref<4x136x128xf32, #tpu.memory_space<vmem>>, vector<1x1x128xf32>
    %13 = vector.shape_cast %12 : vector<1x1x128xf32> to vector<1x128xf32>
    %cst_12 = arith.constant dense<0.000000e+00> : vector<8x128xf32>
    %14 = tpu.matmul %9, %11, %cst_12 {dimension_numbers = #tpu.dot_dimension_numbers<[1], [0], [0], [1], [0, 0, 1, 1], [], []>} : vector<8x128xf32>, vector<128x128xf32>, vector<8x128xf32> -> vector<8x128xf32>
    %15 = vector.broadcast %13 : vector<1x128xf32> to vector<8x128xf32>
    %16 = arith.addf %14, %15 : vector<8x128xf32>
    %cst_13 = arith.constant 0.000000e+00 : f32
    %17 = vector.broadcast %cst_13 : f32 to vector<8x128xf32>
    %18 = arith.maximumf %16, %17 : vector<8x128xf32>
    %c2 = arith.constant 2 : index
    %c0_14 = arith.constant 0 : index
    %c0_15 = arith.constant 0 : index
    %19 = vector.load %arg2[%c2, %c0_14, %c0_15] : memref<4x136x128xf32, #tpu.memory_space<vmem>>, vector<1x128x128xf32>
    %20 = vector.shape_cast %19 : vector<1x128x128xf32> to vector<128x128xf32>
    %c2_16 = arith.constant 2 : index
    %c128_17 = arith.constant 128 : index
    %c0_18 = arith.constant 0 : index
    %21 = vector.load %arg2[%c2_16, %c128_17, %c0_18] : memref<4x136x128xf32, #tpu.memory_space<vmem>>, vector<1x1x128xf32>
    %22 = vector.shape_cast %21 : vector<1x1x128xf32> to vector<1x128xf32>
    %cst_19 = arith.constant dense<0.000000e+00> : vector<8x128xf32>
    %23 = tpu.matmul %18, %20, %cst_19 {dimension_numbers = #tpu.dot_dimension_numbers<[1], [0], [0], [1], [0, 0, 1, 1], [], []>} : vector<8x128xf32>, vector<128x128xf32>, vector<8x128xf32> -> vector<8x128xf32>
    %24 = vector.broadcast %22 : vector<1x128xf32> to vector<8x128xf32>
    %25 = arith.addf %23, %24 : vector<8x128xf32>
    %cst_20 = arith.constant 0.000000e+00 : f32
    %26 = vector.broadcast %cst_20 : f32 to vector<8x128xf32>
    %27 = arith.maximumf %25, %26 : vector<8x128xf32>
    %c3 = arith.constant 3 : index
    %c0_21 = arith.constant 0 : index
    %c0_22 = arith.constant 0 : index
    %28 = vector.load %arg2[%c3, %c0_21, %c0_22] : memref<4x136x128xf32, #tpu.memory_space<vmem>>, vector<1x128x128xf32>
    %29 = vector.shape_cast %28 : vector<1x128x128xf32> to vector<128x128xf32>
    %c3_23 = arith.constant 3 : index
    %c128_24 = arith.constant 128 : index
    %c0_25 = arith.constant 0 : index
    %30 = vector.load %arg2[%c3_23, %c128_24, %c0_25] : memref<4x136x128xf32, #tpu.memory_space<vmem>>, vector<1x1x128xf32>
    %31 = vector.shape_cast %30 : vector<1x1x128xf32> to vector<1x128xf32>
    %cst_26 = arith.constant dense<0.000000e+00> : vector<8x128xf32>
    %32 = tpu.matmul %27, %29, %cst_26 {dimension_numbers = #tpu.dot_dimension_numbers<[1], [0], [0], [1], [0, 0, 1, 1], [], []>} : vector<8x128xf32>, vector<128x128xf32>, vector<8x128xf32> -> vector<8x128xf32>
    %33 = vector.broadcast %31 : vector<1x128xf32> to vector<8x128xf32>
    %34 = arith.addf %32, %33 : vector<8x128xf32>
    %c0_27 = arith.constant 0 : index
    %c0_28 = arith.constant 0 : index
    %35 = vector.load %arg3[%c0_27, %c0_28] : memref<8x128xf32, #tpu.memory_space<vmem>>, vector<8x128xf32>
    tpu.vector_store %arg3[%c0_27, %c0_28], %34 {strides = array<i32>} : memref<8x128xf32, #tpu.memory_space<vmem>>, vector<8x128xf32>,
    return
  }
  func.func @transform_0(%arg0: i32) -> (i32, i32) {
    %c0_i32 = arith.constant 0 : i32
    %c0_i32_0 = arith.constant 0 : i32
    return %arg0, %c0_i32 : i32, i32
  }
  func.func @transform_1(%arg0: i32) -> (i32, i32, i32) {
    %c0_i32 = arith.constant 0 : i32
    %c0_i32_0 = arith.constant 0 : i32
    %c0_i32_1 = arith.constant 0 : i32
    %c0_i32_2 = arith.constant 0 : i32
    return %c0_i32, %c0_i32_0, %c0_i32_1 : i32, i32, i32
  }
  func.func @transform_2(%arg0: i32) -> (i32, i32) {
    %c0_i32 = arith.constant 0 : i32
    %c0_i32_0 = arith.constant 0 : i32
    return %arg0, %c0_i32 : i32, i32
  }
}

</mosaic_0001>

<llo_original>
// kernel: qnet_forward.1
$region0: #{qnet_forward.1}
  #allocation0 [shape = 'u32[]', space=smem, size = 0x4, offset = 0x4, fixed_abs, tag = 'smem constant byte address 0x4 - core index']
  #allocation1 [shape = 'u32[72,128]{1,0:T(1,128)}', space=vmem, size = 0x9000, scoped, tag = 'internal scratch']
  %s0 = inlined_call_operand.hbm [shape: f32[8,32], index: 0, kind: input, shape index: {}]
  %s1 = inlined_call_operand.hbm [shape: f32[4,136,128], index: 1, kind: input, shape index: {}]
  %s2 = inlined_call_operand.hbm [shape: f32[8,128], index: 2, kind: output, shape index: {}]
  %s3 = sld [smem:[#allocation0]]
  $region26: #{qnet_forward.1} parent=0
    _
  %s5 = ssub.s32 1, %s3
  %s6 = scalar_select 0, %s5, %s3
  $region1: #{qnet_forward.1} parent=0
    #allocation2 [shape = 'u8[4096]{0}', space=vmem, size = 0x1000, scoped, tag = 'input window, operand 0, single buffered']
    #allocation3 [shape = 's32[1]{0}', space=sflag, size = 0x4, scoped, tag = 'scoped memory for qnet_forward.1']
    #allocation4 [shape = 's32[1]{0}', space=sflag, size = 0x4, scoped, tag = 'scoped memory for qnet_forward.1']
    #allocation5 [shape = 'u8[278528]{0}', space=vmem, size = 0x44000, scoped, tag = 'input window, operand 1, single buffered']
    #allocation6 [shape = 's32[1]{0}', space=sflag, size = 0x4, scoped, tag = 'scoped memory for qnet_forward.1']
    #allocation7 [shape = 'u8[4096]{0}', space=vmem, size = 0x1000, scoped, tag = 'output window, operand 0, single buffered']
    %7 = vsyncpa [#allocation3], 0
    %8 = vsyncpa [#allocation6], 0
    %9 = vsyncpa [#allocation4], 0
    // Predicated region
    $region2: #{qnet_forward.1} parent=1 // pred_check
      _
    $region3: #{qnet_forward.1} parent=1 // pred_check_branch
      %11 = sbr.rel (0) target = $region5
    $region4: #{qnet_forward.1} parent=1 // pred_region
      %13 = vsyncadd [#allocation3], 0
      %s15 = sshll.u32 %s0, 4
      %s16 = int_to_ptr.hbm [resolvable:$true] %s15
      %s17 = sshll.u32 [#allocation2], 4
      %s18 = int_to_ptr.vmem [resolvable:$true] %s17
      %20 = dma.hbm_to_vmem [thread:$0]  %s16, 128, %s18, [#allocation3]
    $region5: #{qnet_forward.1} parent=1 // pred_fallthru
      _
    // Predicated region
    $region6: #{qnet_forward.1} parent=1 // pred_check
      _
    $region7: #{qnet_forward.1} parent=1 // pred_check_branch
      %22 = sbr.rel (0) target = $region9
    $region8: #{qnet_forward.1} parent=1 // pred_region
      %24 = vsyncadd [#allocation6], 0
      %s25 = sshll.u32 %s1, 4
      %s26 = int_to_ptr.hbm [resolvable:$true] %s25
      %s27 = sshll.u32 [#allocation5], 4
      %s28 = int_to_ptr.vmem [resolvable:$true] %s27
      %33 = dma.hbm_to_vmem [thread:$0]  %s26, 8704, %s28, [#allocation6], 128, 128, 8
    $region9: #{qnet_forward.1} parent=1 // pred_fallthru
      _
    // Predicated region
    $region10: #{qnet_forward.1} parent=1 // pred_check
      _
    $region11: #{qnet_forward.1} parent=1 // pred_check_branch
      %35 = sbr.rel (0) target = $region13
    $region12: #{qnet_forward.1} parent=1 // pred_region
      %37 = dma.done [#allocation3], 128
    $region13: #{qnet_forward.1} parent=1 // pred_fallthru
      _
    // Predicated region
    $region14: #{qnet_forward.1} parent=1 // pred_check
      _
    $region15: #{qnet_forward.1} parent=1 // pred_check_branch
      %39 = sbr.rel (0) target = $region17
    $region16: #{qnet_forward.1} parent=1 // pred_region
      %41 = dma.done [#allocation6], 8704
    $region17: #{qnet_forward.1} parent=1 // pred_fallthru
      _
    %v42 = vld [vmem:[#allocation2] sm:$0xff]
    %v43 = vld [vmem:[#allocation5] sm:$0xff]
    %v44 = vld [vmem:[#allocation5 + $0x8] sm:$0xff]
    %v45 = vld [vmem:[#allocation5 + $0x10] sm:$0xff]
    %v46 = vld [vmem:[#allocation5 + $0x18] sm:$0xff]
    %v47 = vld [vmem:[#allocation5 + $0x80] sm:$0x1]
    %v48 = vperm.slane %v47, 0
    %vm49 = vcmask 261120
    %v51 = vsel %vm49, %v42, 0
    %53 = vmatpush.msra.mxu0 0.0
    %54 = vmatpush.msra.mxu0 0.0
    %55 = vmatpush.msra.mxu0 0.0
    %56 = vmatpush.msra.mxu0 0.0
    %57 = vmatpush.msra.mxu0 0.0
    %58 = vmatpush.msra.mxu0 0.0
    %59 = vmatpush.msra.mxu0 0.0
    %60 = vmatpush.msra.mxu0 0.0
    %61 = vmatpush.msra.mxu0 0.0
    %62 = vmatpush.msra.mxu0 0.0
    %63 = vmatpush.msra.mxu0 0.0
    %64 = vmatpush.msra.mxu0 0.0
    %65 = vmatpush.msra.mxu0 %v46
    %66 = vmatpush.msra.mxu0 %v45
    %67 = vmatpush.msra.mxu0 %v44
    %68 = vmatpush.msra.mxu0 %v43
    %69 = vmatmul.f32.gmra.mxu0 %v51
    %v70 = vpop.f32.mrf.mxu0
    %v71 = vadd.f32 %v48, %v70
    %72 = vdwg.mxu0
    %v73 = vmax.f32 %v71, 0.0
    %s74 = scalar_lea.vmem [#allocation5], 136
    %v75 = vld [vmem:[%s74] sm:$0xff]
    %v76 = vld [vmem:[%s74 + $0x8] sm:$0xff]
    %v77 = vld [vmem:[%s74 + $0x10] sm:$0xff]
    %v78 = vld [vmem:[%s74 + $0x18] sm:$0xff]
    %v79 = vld [vmem:[%s74 + $0x20] sm:$0xff]
    %v80 = vld [vmem:[%s74 + $0x28] sm:$0xff]
    %v81 = vld [vmem:[%s74 + $0x30] sm:$0xff]
    %v82 = vld [vmem:[%s74 + $0x38] sm:$0xff]
    %v83 = vld [vmem:[%s74 + $0x40] sm:$0xff]
    %v84 = vld [vmem:[%s74 + $0x48] sm:$0xff]
    %v85 = vld [vmem:[%s74 + $0x50] sm:$0xff]
    %v86 = vld [vmem:[%s74 + $0x58] sm:$0xff]
    %v87 = vld [vmem:[%s74 + $0x60] sm:$0xff]
    %v88 = vld [vmem:[%s74 + $0x68] sm:$0xff]
    %v89 = vld [vmem:[%s74 + $0x70] sm:$0xff]
    %v90 = vld [vmem:[%s74 + $0x78] sm:$0xff]
    %v91 = vld [vmem:[%s74 + $0x80] sm:$0x1]
    %v92 = vperm.slane %v91, 0
    %93 = vmatpush.msra.mxu0 %v90
    %94 = vmatpush.msra.mxu0 %v89
    %95 = vmatpush.msra.mxu0 %v88
    %96 = vmatpush.msra.mxu0 %v87
    %97 = vmatpush.msra.mxu0 %v86
    %98 = vmatpush.msra.mxu0 %v85
    %99 = vmatpush.msra.mxu0 %v84
    %100 = vmatpush.msra.mxu0 %v83
    %101 = vmatpush.msra.mxu0 %v82
    %102 = vmatpush.msra.mxu0 %v81
    %103 = vmatpush.msra.mxu0 %v80
    %104 = vmatpush.msra.mxu0 %v79
    %105 = vmatpush.msra.mxu0 %v78
    %106 = vmatpush.msra.mxu0 %v77
    %107 = vmatpush.msra.mxu0 %v76
    %108 = vmatpush.msra.mxu0 %v75
    %109 = vmatmul.f32.gmra.mxu0 %v73
    %v110 = vpop.f32.mrf.mxu0
    %v111 = vadd.f32 %v92, %v110
    %112 = vdwg.mxu0
    %v113 = vmax.f32 %v111, 0.0
    %s114 = scalar_lea.vmem [#allocation5], 272
    %v115 = vld [vmem:[%s114] sm:$0xff]
    %v116 = vld [vmem:[%s114 + $0x8] sm:$0xff]
    %v117 = vld [vmem:[%s114 + $0x10] sm:$0xff]
    %v118 = vld [vmem:[%s114 + $0x18] sm:$0xff]
    %v119 = vld [vmem:[%s114 + $0x20] sm:$0xff]
    %v120 = vld [vmem:[%s114 + $0x28] sm:$0xff]
    %v121 = vld [vmem:[%s114 + $0x30] sm:$0xff]
    %v122 = vld [vmem:[%s114 + $0x38] sm:$0xff]
    %v123 = vld [vmem:[%s114 + $0x40] sm:$0xff]
    %v124 = vld [vmem:[%s114 + $0x48] sm:$0xff]
    %v125 = vld [vmem:[%s114 + $0x50] sm:$0xff]
    %v126 = vld [vmem:[%s114 + $0x58] sm:$0xff]
    %v127 = vld [vmem:[%s114 + $0x60] sm:$0xff]
    %v128 = vld [vmem:[%s114 + $0x68] sm:$0xff]
    %v129 = vld [vmem:[%s114 + $0x70] sm:$0xff]
    %v130 = vld [vmem:[%s114 + $0x78] sm:$0xff]
    %v131 = vld [vmem:[%s114 + $0x80] sm:$0x1]
    %v132 = vperm.slane %v131, 0
    %133 = vmatpush.msra.mxu0 %v130
    %134 = vmatpush.msra.mxu0 %v129
    %135 = vmatpush.msra.mxu0 %v128
    %136 = vmatpush.msra.mxu0 %v127
    %137 = vmatpush.msra.mxu0 %v126
    %138 = vmatpush.msra.mxu0 %v125
    %139 = vmatpush.msra.mxu0 %v124
    %140 = vmatpush.msra.mxu0 %v123
    %141 = vmatpush.msra.mxu0 %v122
    %142 = vmatpush.msra.mxu0 %v121
    %143 = vmatpush.msra.mxu0 %v120
    %144 = vmatpush.msra.mxu0 %v119
    %145 = vmatpush.msra.mxu0 %v118
    %146 = vmatpush.msra.mxu0 %v117
    %147 = vmatpush.msra.mxu0 %v116
    %148 = vmatpush.msra.mxu0 %v115
    %149 = vmatmul.f32.gmra.mxu0 %v113
    %v150 = vpop.f32.mrf.mxu0
    %v151 = vadd.f32 %v132, %v150
    %152 = vdwg.mxu0
    %v153 = vmax.f32 %v151, 0.0
    %s154 = scalar_lea.vmem [#allocation5], 408
    %v155 = vld [vmem:[%s154] sm:$0xff]
    %v156 = vld [vmem:[%s154 + $0x8] sm:$0xff]
    %v157 = vld [vmem:[%s154 + $0x10] sm:$0xff]
    %v158 = vld [vmem:[%s154 + $0x18] sm:$0xff]
    %v159 = vld [vmem:[%s154 + $0x20] sm:$0xff]
    %v160 = vld [vmem:[%s154 + $0x28] sm:$0xff]
    %v161 = vld [vmem:[%s154 + $0x30] sm:$0xff]
    %v162 = vld [vmem:[%s154 + $0x38] sm:$0xff]
    %v163 = vld [vmem:[%s154 + $0x40] sm:$0xff]
    %v164 = vld [vmem:[%s154 + $0x48] sm:$0xff]
    %v165 = vld [vmem:[%s154 + $0x50] sm:$0xff]
    %v166 = vld [vmem:[%s154 + $0x58] sm:$0xff]
    %v167 = vld [vmem:[%s154 + $0x60] sm:$0xff]
    %v168 = vld [vmem:[%s154 + $0x68] sm:$0xff]
    %v169 = vld [vmem:[%s154 + $0x70] sm:$0xff]
    %v170 = vld [vmem:[%s154 + $0x78] sm:$0xff]
    %v171 = vld [vmem:[%s154 + $0x80] sm:$0x1]
    %v172 = vperm.slane %v171, 0
    %173 = vmatpush.msra.mxu0 %v170
    %174 = vmatpush.msra.mxu0 %v169
    %175 = vmatpush.msra.mxu0 %v168
    %176 = vmatpush.msra.mxu0 %v167
    %177 = vmatpush.msra.mxu0 %v166
    %178 = vmatpush.msra.mxu0 %v165
    %179 = vmatpush.msra.mxu0 %v164
    %180 = vmatpush.msra.mxu0 %v163
    %181 = vmatpush.msra.mxu0 %v162
    %182 = vmatpush.msra.mxu0 %v161
    %183 = vmatpush.msra.mxu0 %v160
    %184 = vmatpush.msra.mxu0 %v159
    %185 = vmatpush.msra.mxu0 %v158
    %186 = vmatpush.msra.mxu0 %v157
    %187 = vmatpush.msra.mxu0 %v156
    %188 = vmatpush.msra.mxu0 %v155
    %189 = vmatmul.f32.gmra.mxu0 %v153
    %v190 = vpop.f32.mrf.mxu0
    %v191 = vadd.f32 %v172, %v190
    %192 = vdwg.mxu0
    %193 = vst [vmem:[#allocation7] sm:$0xff] %v191
    // Predicated region
    $region18: #{qnet_forward.1} parent=1 // pred_check
      _
    $region19: #{qnet_forward.1} parent=1 // pred_check_branch
      %195 = sbr.rel (0) target = $region21
    $region20: #{qnet_forward.1} parent=1 // pred_region
      %197 = vsyncadd [#allocation4], 0
      %s199 = sshll.u32 [#allocation7], 4
      %s200 = int_to_ptr.vmem [resolvable:$true] %s199
      %s201 = sshll.u32 %s2, 4
      %s202 = int_to_ptr.hbm [resolvable:$true] %s201
      %204 = dma.vmem_to_hbm [thread:$0]  %s200, 128, %s202, [#allocation4]
    $region21: #{qnet_forward.1} parent=1 // pred_fallthru
      _
    // Predicated region
    $region22: #{qnet_forward.1} parent=1 // pred_check
      _
    $region23: #{qnet_forward.1} parent=1 // pred_check_branch
      %206 = sbr.rel (0) target = $region25
    $region24: #{qnet_forward.1} parent=1 // pred_region
      %208 = dma.done [#allocation4], 128
    $region25: #{qnet_forward.1} parent=1 // pred_fallthru
      _
    %209 = vsyncpa [#allocation3], 1
    %210 = vsyncpa [#allocation6], 1
    %211 = vsyncpa [#allocation4], 1

</llo_original>
